<compile_context>
chip_gen: v5e
topology: v5e:2x2
jax: 0.10.0
libtpu: 0.0.40
codegen_flags: <defaults>
</compile_context>

<pallas_src>
import jax
import jax.numpy as jnp
import numpy as np
from jax.experimental import pallas as pl
from jax.experimental.pallas import tpu as pltpu

MAX_TB = 4096   # max rows per batch tile (single-TC chips: fewer grid steps)


def _cdiv(a, b):
    return (a + b - 1) // b


def _round_up(n, m):
    return ((n + m - 1) // m) * m


def _num_tensorcores():
    """Best-effort TensorCores-per-chip query (2 on v7x, 1 on v5e/v6e)."""
    try:
        info = pltpu.get_tpu_info()
        for attr in ("num_tensorcores", "tensorcores_per_chip",
                     "num_cores", "cores_per_chip"):
            v = getattr(info, attr, None)
            if isinstance(v, int) and v > 0:
                return v
    except Exception:
        pass
    try:
        kind = jax.devices()[0].device_kind.lower()
        if "v7" in kind:
            return 2
    except Exception:
        pass
    return 1


_NUM_TC = _num_tensorcores()


def qnetwork_kernel(x_ref, w1_ref, b1_ref, w2_ref, b2_ref, w3_ref, b3_ref, y_ref):
    bf16 = jnp.bfloat16
    x = x_ref[...]                                                    # [TB, in] f32
    # fc1 + relu  (bf16 MXU operands, f32 accumulate / bias / relu)
    a1 = jnp.dot(x.astype(bf16), w1_ref[...],
                 preferred_element_type=jnp.float32) + b1_ref[...]
    h1 = jnp.maximum(a1, 0.0)
    # fc2 + relu
    a2 = jnp.dot(h1.astype(bf16), w2_ref[...],
                 preferred_element_type=jnp.float32) + b2_ref[...]
    h2 = jnp.maximum(a2, 0.0)
    # out (stored at natural width; no lane padding in HBM)
    y = jnp.dot(h2.astype(bf16), w3_ref[...],
                preferred_element_type=jnp.float32) + b3_ref[...]
    y_ref[...] = y.astype(y_ref.dtype)


def _qnetwork_forward_impl(x, params):
    """x: [B, input_size] float32. params: w1,b1,w2,b2,w3,b3 with weights
    stored [in_features, out_features] (transpose of nn.Linear)."""
    w1, b1, w2, b2, w3, b3 = (params[k] for k in ("w1", "b1", "w2", "b2", "w3", "b3"))
    B, in_size = x.shape
    h1_size = w1.shape[1]
    h2_size = w2.shape[1]
    out_size = w3.shape[1]

    # MXU is bf16 on all TPU generations: pre-cast the (tiny) weights once per
    # call; activations are cast at the dot inside the kernel.
    w1b, w2b, w3b = (w.astype(jnp.bfloat16) for w in (w1, w2, w3))

    # --- batch tiling --------------------------------------------------------
    # Even split so padding never exceeds 7 rows per tile; on multi-TC chips
    # (v7x) keep >= 2 tiles per TensorCore whenever B >= 16.
    tb_cap = MAX_TB
    if _NUM_TC > 1 and B >= 16:
        tb_cap = min(tb_cap, _round_up(_cdiv(B, 2 * _NUM_TC), 8))
    num_tiles = max(1, _cdiv(B, tb_cap))
    TB = _round_up(_cdiv(B, num_tiles), 8)
    B_pad = num_tiles * TB
    if B_pad != B:
        x = jnp.pad(x, ((0, B_pad - B), (0, 0)))

    y = pl.pallas_call(
        qnetwork_kernel,
        out_shape=jax.ShapeDtypeStruct((B_pad, out_size), jnp.float32),
        grid=(num_tiles,),
        in_specs=[
            # streamed activations: new batch tile each grid step
            pl.BlockSpec((TB, in_size), lambda i: (i, 0)),
            # weights / biases: constant index_map -> fetched once, VMEM-resident
            pl.BlockSpec((in_size, h1_size), lambda i: (0, 0)),
            pl.BlockSpec((1, h1_size), lambda i: (0, 0)),
            pl.BlockSpec((h1_size, h2_size), lambda i: (0, 0)),
            pl.BlockSpec((1, h2_size), lambda i: (0, 0)),
            pl.BlockSpec((h2_size, out_size), lambda i: (0, 0)),
            pl.BlockSpec((1, out_size), lambda i: (0, 0)),
        ],
        out_specs=pl.BlockSpec((TB, out_size), lambda i: (i, 0)),
        compiler_params=pltpu.CompilerParams(
            dimension_semantics=("parallel",),   # shard batch tiles across TCs (v7x)
        ),
    )(x, w1b, b1, w2b, b2, w3b, b3)

    return y if B_pad == B else y[:B]


# Keep padding + kernel + slice inside one jit so plumbing cost is amortized.
qnetwork_forward = jax.jit(_qnetwork_forward_impl)


def init_params(key, input_size=4, hidden_layers_size=(32, 32), output_size=4):
    """Deterministic init mirroring the PyTorch module's shapes.
    Weights: xavier_uniform (gain=1). Biases: PyTorch Linear default
    uniform(-1/sqrt(fan_in), 1/sqrt(fan_in))."""
    h1, h2 = hidden_layers_size
    ks = jax.random.split(key, 6)

    def xavier(k, fan_in, fan_out):
        bound = float(np.sqrt(6.0 / (fan_in + fan_out)))
        # stored as [in, out] so the kernel does x @ W
        return jax.random.uniform(k, (fan_in, fan_out), jnp.float32, -bound, bound)

    def bias(k, fan_in, fan_out):
        bound = float(1.0 / np.sqrt(fan_in))
        return jax.random.uniform(k, (1, fan_out), jnp.float32, -bound, bound)

    return {
        "w1": xavier(ks[0], input_size, h1),
        "b1": bias(ks[1], input_size, h1),
        "w2": xavier(ks[2], h1, h2),
        "b2": bias(ks[3], h1, h2),
        "w3": xavier(ks[4], h2, output_size),
        "b3": bias(ks[5], h2, output_size),
    }


def qnetwork_ref(x, p):
    """Pure-JAX f32 reference of the PyTorch forward."""
    h1 = jnp.maximum(x @ p["w1"] + p["b1"], 0.0)
    h2 = jnp.maximum(h1 @ p["w2"] + p["b2"], 0.0)
    return h2 @ p["w3"] + p["b3"]


if __name__ == "__main__":
    key = jax.random.PRNGKey(0)
    k_param, k_x1, k_x2, k_x3 = jax.random.split(key, 4)

    INPUT, HIDDEN, OUTPUT = 4, (32, 32), 4
    params = init_params(k_param, INPUT, HIDDEN, OUTPUT)

    # bf16 MXU operands (f32 accumulate) -> compare to the f32 reference with
    # a correspondingly loosened tolerance.
    RTOL, ATOL = 2e-2, 2e-2

    # Small batch consistent with the module's typical single-state use.
    x_small = jax.random.normal(k_x1, (8, INPUT), jnp.float32)
    y_small = jax.block_until_ready(qnetwork_forward(x_small, params))
    np.testing.assert_allclose(
        np.asarray(y_small), np.asarray(qnetwork_ref(x_small, params)),
        rtol=RTOL, atol=ATOL)

    # Larger batch: exercises the batch grid and VMEM-resident weights.
    x_big = jax.random.normal(k_x2, (2000, INPUT), jnp.float32)
    y_big = jax.block_until_ready(qnetwork_forward(x_big, params))
    np.testing.assert_allclose(
        np.asarray(y_big), np.asarray(qnetwork_ref(x_big, params)),
        rtol=RTOL, atol=ATOL)

    # Adversarial batch size: exercises even-split tiling + small row padding.
    x_odd = jax.random.normal(k_x3, (1025, INPUT), jnp.float32)
    y_odd = jax.block_until_ready(qnetwork_forward(x_odd, params))
    np.testing.assert_allclose(
        np.asarray(y_odd), np.asarray(qnetwork_ref(x_odd, params)),
        rtol=RTOL, atol=ATOL)

    print("KERNEL_OK")
</pallas_src>

<mosaic_0001>
module attributes {stable_mosaic.version = 11 : i64} {
  func.func @qnetwork_kernel(%arg0: i32, %arg1: memref<8x4xf32, #tpu.memory_space<vmem>>, %arg2: memref<4x32xbf16, #tpu.memory_space<vmem>>, %arg3: memref<1x32xf32, #tpu.memory_space<vmem>>, %arg4: memref<32x32xbf16, #tpu.memory_space<vmem>>, %arg5: memref<1x32xf32, #tpu.memory_space<vmem>>, %arg6: memref<32x4xbf16, #tpu.memory_space<vmem>>, %arg7: memref<1x4xf32, #tpu.memory_space<vmem>>, %arg8: memref<8x4xf32, #tpu.memory_space<vmem>>) attributes {dimension_semantics = [#tpu.dimension_semantics<parallel>], iteration_bounds = array<i64: 1>, scalar_prefetch = 0 : i64, scratch_operands = 0 : i64, tpu.core_type = #tpu.core_type<tc>, window_params = [{transform_indices = @transform_0, window_bounds = array<i64: 8, 4>}, {pipeline_mode = #tpu.pipeline_mode<synchronous>, transform_indices = @transform_1, window_bounds = array<i64: 4, 32>}, {pipeline_mode = #tpu.pipeline_mode<synchronous>, transform_indices = @transform_2, window_bounds = array<i64: 1, 32>}, {pipeline_mode = #tpu.pipeline_mode<synchronous>, transform_indices = @transform_3, window_bounds = array<i64: 32, 32>}, {pipeline_mode = #tpu.pipeline_mode<synchronous>, transform_indices = @transform_4, window_bounds = array<i64: 1, 32>}, {pipeline_mode = #tpu.pipeline_mode<synchronous>, transform_indices = @transform_5, window_bounds = array<i64: 32, 4>}, {pipeline_mode = #tpu.pipeline_mode<synchronous>, transform_indices = @transform_6, window_bounds = array<i64: 1, 4>}, {transform_indices = @transform_7, window_bounds = array<i64: 8, 4>}]} {
    %c0 = arith.constant 0 : index
    %c0_0 = arith.constant 0 : index
    %0 = vector.load %arg1[%c0, %c0_0] : memref<8x4xf32, #tpu.memory_space<vmem>>, vector<8x4xf32>
    %1 = arith.truncf %0 : vector<8x4xf32> to vector<8x4xbf16>
    %c0_1 = arith.constant 0 : index
    %c0_2 = arith.constant 0 : index
    %2 = vector.load %arg2[%c0_1, %c0_2] : memref<4x32xbf16, #tpu.memory_space<vmem>>, vector<4x32xbf16>
    %cst = arith.constant dense<0.000000e+00> : vector<8x32xf32>
    %3 = tpu.matmul %1, %2, %cst {dimension_numbers = #tpu.dot_dimension_numbers<[1], [0], [0], [1], [0, 0, 1, 1], [], []>} : vector<8x4xbf16>, vector<4x32xbf16>, vector<8x32xf32> -> vector<8x32xf32>
    %c0_3 = arith.constant 0 : index
    %c0_4 = arith.constant 0 : index
    %4 = vector.load %arg3[%c0_3, %c0_4] : memref<1x32xf32, #tpu.memory_space<vmem>>, vector<1x32xf32>
    %5 = vector.broadcast %4 : vector<1x32xf32> to vector<8x32xf32>
    %6 = arith.addf %3, %5 : vector<8x32xf32>
    %cst_5 = arith.constant 0.000000e+00 : f32
    %7 = vector.broadcast %cst_5 : f32 to vector<8x32xf32>
    %8 = arith.maximumf %6, %7 : vector<8x32xf32>
    %9 = arith.truncf %8 : vector<8x32xf32> to vector<8x32xbf16>
    %c0_6 = arith.constant 0 : index
    %c0_7 = arith.constant 0 : index
    %10 = vector.load %arg4[%c0_6, %c0_7] : memref<32x32xbf16, #tpu.memory_space<vmem>>, vector<32x32xbf16>
    %cst_8 = arith.constant dense<0.000000e+00> : vector<8x32xf32>
    %11 = tpu.matmul %9, %10, %cst_8 {dimension_numbers = #tpu.dot_dimension_numbers<[1], [0], [0], [1], [0, 0, 1, 1], [], []>} : vector<8x32xbf16>, vector<32x32xbf16>, vector<8x32xf32> -> vector<8x32xf32>
    %c0_9 = arith.constant 0 : index
    %c0_10 = arith.constant 0 : index
    %12 = vector.load %arg5[%c0_9, %c0_10] : memref<1x32xf32, #tpu.memory_space<vmem>>, vector<1x32xf32>
    %13 = vector.broadcast %12 : vector<1x32xf32> to vector<8x32xf32>
    %14 = arith.addf %11, %13 : vector<8x32xf32>
    %cst_11 = arith.constant 0.000000e+00 : f32
    %15 = vector.broadcast %cst_11 : f32 to vector<8x32xf32>
    %16 = arith.maximumf %14, %15 : vector<8x32xf32>
    %17 = arith.truncf %16 : vector<8x32xf32> to vector<8x32xbf16>
    %c0_12 = arith.constant 0 : index
    %c0_13 = arith.constant 0 : index
    %18 = vector.load %arg6[%c0_12, %c0_13] : memref<32x4xbf16, #tpu.memory_space<vmem>>, vector<32x4xbf16>
    %cst_14 = arith.constant dense<0.000000e+00> : vector<8x4xf32>
    %19 = tpu.matmul %17, %18, %cst_14 {dimension_numbers = #tpu.dot_dimension_numbers<[1], [0], [0], [1], [0, 0, 1, 1], [], []>} : vector<8x32xbf16>, vector<32x4xbf16>, vector<8x4xf32> -> vector<8x4xf32>
    %c0_15 = arith.constant 0 : index
    %c0_16 = arith.constant 0 : index
    %20 = vector.load %arg7[%c0_15, %c0_16] : memref<1x4xf32, #tpu.memory_space<vmem>>, vector<1x4xf32>
    %21 = vector.broadcast %20 : vector<1x4xf32> to vector<8x4xf32>
    %22 = arith.addf %19, %21 : vector<8x4xf32>
    %c0_17 = arith.constant 0 : index
    %c0_18 = arith.constant 0 : index
    %23 = vector.load %arg8[%c0_17, %c0_18] : memref<8x4xf32, #tpu.memory_space<vmem>>, vector<8x4xf32>
    tpu.vector_store %arg8[%c0_17, %c0_18], %22 {strides = array<i32>} : memref<8x4xf32, #tpu.memory_space<vmem>>, vector<8x4xf32>,
    return
  }
  func.func @transform_0(%arg0: i32) -> (i32, i32) {
    %c0_i32 = arith.constant 0 : i32
    %c0_i32_0 = arith.constant 0 : i32
    return %arg0, %c0_i32 : i32, i32
  }
  func.func @transform_1(%arg0: i32) -> (i32, i32) {
    %c0_i32 = arith.constant 0 : i32
    %c0_i32_0 = arith.constant 0 : i32
    %c0_i32_1 = arith.constant 0 : i32
    return %c0_i32, %c0_i32_0 : i32, i32
  }
  func.func @transform_2(%arg0: i32) -> (i32, i32) {
    %c0_i32 = arith.constant 0 : i32
    %c0_i32_0 = arith.constant 0 : i32
    %c0_i32_1 = arith.constant 0 : i32
    return %c0_i32, %c0_i32_0 : i32, i32
  }
  func.func @transform_3(%arg0: i32) -> (i32, i32) {
    %c0_i32 = arith.constant 0 : i32
    %c0_i32_0 = arith.constant 0 : i32
    %c0_i32_1 = arith.constant 0 : i32
    return %c0_i32, %c0_i32_0 : i32, i32
  }
  func.func @transform_4(%arg0: i32) -> (i32, i32) {
    %c0_i32 = arith.constant 0 : i32
    %c0_i32_0 = arith.constant 0 : i32
    %c0_i32_1 = arith.constant 0 : i32
    return %c0_i32, %c0_i32_0 : i32, i32
  }
  func.func @transform_5(%arg0: i32) -> (i32, i32) {
    %c0_i32 = arith.constant 0 : i32
    %c0_i32_0 = arith.constant 0 : i32
    %c0_i32_1 = arith.constant 0 : i32
    return %c0_i32, %c0_i32_0 : i32, i32
  }
  func.func @transform_6(%arg0: i32) -> (i32, i32) {
    %c0_i32 = arith.constant 0 : i32
    %c0_i32_0 = arith.constant 0 : i32
    %c0_i32_1 = arith.constant 0 : i32
    return %c0_i32, %c0_i32_0 : i32, i32
  }
  func.func @transform_7(%arg0: i32) -> (i32, i32) {
    %c0_i32 = arith.constant 0 : i32
    %c0_i32_0 = arith.constant 0 : i32
    return %arg0, %c0_i32 : i32, i32
  }
}

</mosaic_0001>

<llo_original>
// kernel: _qnetwork_forward_impl.1
$region0: #{_qnetwork_forward_impl.1}
  #allocation0 [shape = 'u32[]', space=smem, size = 0x4, offset = 0x4, fixed_abs, tag = 'smem constant byte address 0x4 - core index']
  #allocation1 [shape = 'u32[72,128]{1,0:T(1,128)}', space=vmem, size = 0x9000, scoped, tag = 'internal scratch']
  %s0 = inlined_call_operand.vmem [shape: f32[8,4], index: 0, kind: input, shape index: {}]
  %s1 = inlined_call_operand.vmem [shape: bf16[4,32], index: 1, kind: input, shape index: {}]
  %s2 = inlined_call_operand.vmem [shape: f32[1,32], index: 2, kind: input, shape index: {}]
  %s3 = inlined_call_operand.vmem [shape: bf16[32,32], index: 3, kind: input, shape index: {}]
  %s4 = inlined_call_operand.vmem [shape: f32[1,32], index: 4, kind: input, shape index: {}]
  %s5 = inlined_call_operand.vmem [shape: bf16[32,4], index: 5, kind: input, shape index: {}]
  %s6 = inlined_call_operand.vmem [shape: f32[1,4], index: 6, kind: input, shape index: {}]
  %s7 = inlined_call_operand.vmem [shape: f32[8,4], index: 7, kind: output, shape index: {}]
  %s8 = sld [smem:[#allocation0]]
  $region38: #{_qnetwork_forward_impl.1} parent=0
    _
  %s10 = ssub.s32 1, %s8
  %s11 = scalar_select 0, %s10, %s8
  // Predicated region
  $region2: #{_qnetwork_forward_impl.1} parent=0 // pred_check
    _
  $region3: #{_qnetwork_forward_impl.1} parent=0 // pred_check_branch
    %13 = sbr.rel (0) target = $region5
  $region4: #{_qnetwork_forward_impl.1} parent=0 // pred_region
    _
  $region5: #{_qnetwork_forward_impl.1} parent=0 // pred_fallthru
    _
  // Predicated region
  $region6: #{_qnetwork_forward_impl.1} parent=0 // pred_check
    _
  $region7: #{_qnetwork_forward_impl.1} parent=0 // pred_check_branch
    %15 = sbr.rel (0) target = $region9
  $region8: #{_qnetwork_forward_impl.1} parent=0 // pred_region
    _
  $region9: #{_qnetwork_forward_impl.1} parent=0 // pred_fallthru
    _
  // Predicated region
  $region10: #{_qnetwork_forward_impl.1} parent=0 // pred_check
    _
  $region11: #{_qnetwork_forward_impl.1} parent=0 // pred_check_branch
    %17 = sbr.rel (0) target = $region13
  $region12: #{_qnetwork_forward_impl.1} parent=0 // pred_region
    _
  $region13: #{_qnetwork_forward_impl.1} parent=0 // pred_fallthru
    _
  // Predicated region
  $region14: #{_qnetwork_forward_impl.1} parent=0 // pred_check
    _
  $region15: #{_qnetwork_forward_impl.1} parent=0 // pred_check_branch
    %19 = sbr.rel (0) target = $region17
  $region16: #{_qnetwork_forward_impl.1} parent=0 // pred_region
    _
  $region17: #{_qnetwork_forward_impl.1} parent=0 // pred_fallthru
    _
  // Predicated region
  $region18: #{_qnetwork_forward_impl.1} parent=0 // pred_check
    _
  $region19: #{_qnetwork_forward_impl.1} parent=0 // pred_check_branch
    %21 = sbr.rel (0) target = $region21
  $region20: #{_qnetwork_forward_impl.1} parent=0 // pred_region
    _
  $region21: #{_qnetwork_forward_impl.1} parent=0 // pred_fallthru
    _
  // Predicated region
  $region22: #{_qnetwork_forward_impl.1} parent=0 // pred_check
    _
  $region23: #{_qnetwork_forward_impl.1} parent=0 // pred_check_branch
    %23 = sbr.rel (0) target = $region25
  $region24: #{_qnetwork_forward_impl.1} parent=0 // pred_region
    _
  $region25: #{_qnetwork_forward_impl.1} parent=0 // pred_fallthru
    _
  // Predicated region
  $region26: #{_qnetwork_forward_impl.1} parent=0 // pred_check
    _
  $region27: #{_qnetwork_forward_impl.1} parent=0 // pred_check_branch
    %25 = sbr.rel (0) target = $region29
  $region28: #{_qnetwork_forward_impl.1} parent=0 // pred_region
    _
  $region29: #{_qnetwork_forward_impl.1} parent=0 // pred_fallthru
    _
  %v27 = vld [vmem:[%s0] sm:$0xff]
  %v28 = vpack.c.bf16 %v27, %v27
  %v29 = vld [vmem:[%s1] sm:$0x3]
  %v30 = vld [vmem:[%s2] sm:$0x1]
  %v32 = vperm.slane %v30, 0
  %vm34 = vcmask 31744
  %v36 = vsel %vm34, %v28, 0
  %vm38 = vcmask 1041408
  %v40 = vsel %vm38, %v29, 0
  %42 = vmatpush.bf16.msra.mxu0 0
  %43 = vmatpush.bf16.msra.mxu0 0
  %44 = vmatpush.bf16.msra.mxu0 0
  %45 = vmatpush.bf16.msra.mxu0 0
  %46 = vmatpush.bf16.msra.mxu0 0
  %47 = vmatpush.bf16.msra.mxu0 0
  %48 = vmatpush.bf16.msra.mxu0 0
  %49 = vmatpush.bf16.msra.mxu0 %v40
  %50 = vmatmul.bf16.gmra.mxu0 %v36
  %v51 = vpop.f32.mrf.mxu0
  %v52 = vadd.f32 %v32, %v51
  %v53 = vpop.f32.mrf.mxu0
  %54 = vdwg.mxu0
  %v55 = vmax.f32 %v52, 0.0
  %v56 = vpack.c.bf16 %v55, %v55
  %v57 = vld [vmem:[%s3] sm:$0xf]
  %v58 = vld [vmem:[%s3 + $0x4] sm:$0xf]
  %v59 = vld [vmem:[%s3 + $0x8] sm:$0xf]
  %v60 = vld [vmem:[%s3 + $0xc] sm:$0xf]
  %v61 = vld [vmem:[%s4] sm:$0x1]
  %v63 = vperm.slane %v61, 0
  %v69 = vunpack.c.l.b16 %v57
  %v70 = vunpack.c.l.b16 %v58
  %v71 = vunpack.c.l.b16 %v59
  %v72 = vunpack.c.l.b16 %v60
  %v73 = vpack.c.b16 %v70, %v69
  %v74 = vpack.c.b16 %v72, %v71
  %vm77 = vcmask 261120
  %v79 = vsel %vm77, %v56, 0
  %81 = vmatpush.bf16.msra.mxu0 0
  %82 = vmatpush.bf16.msra.mxu0 0
  %83 = vmatpush.bf16.msra.mxu0 0
  %84 = vmatpush.bf16.msra.mxu0 0
  %85 = vmatpush.bf16.msra.mxu0 0
  %86 = vmatpush.bf16.msra.mxu0 0
  %87 = vmatpush.bf16.msra.mxu0 %v74
  %88 = vmatpush.bf16.msra.mxu0 %v73
  %89 = vmatmul.bf16.gmra.mxu0 %v79
  %v90 = vpop.f32.mrf.mxu0
  %v91 = vadd.f32 %v63, %v90
  %v92 = vpop.f32.mrf.mxu0
  %93 = vdwg.mxu0
  %v94 = vmax.f32 %v91, 0.0
  %v95 = vpack.c.bf16 %v94, %v94
  %v96 = vld [vmem:[%s5] sm:$0xf]
  %v97 = vld [vmem:[%s5 + $0x4] sm:$0xf]
  %v98 = vld [vmem:[%s5 + $0x8] sm:$0xf]
  %v99 = vld [vmem:[%s5 + $0xc] sm:$0xf]
  %v100 = vld [vmem:[%s6] sm:$0x1]
  %v102 = vperm.slane %v100, 0
  %v108 = vunpack.c.l.b16 %v96
  %v109 = vunpack.c.l.b16 %v97
  %v110 = vunpack.c.l.b16 %v98
  %v111 = vunpack.c.l.b16 %v99
  %v112 = vpack.c.b16 %v109, %v108
  %v113 = vpack.c.b16 %v111, %v110
  %v117 = vsel %vm77, %v95, 0
  %119 = vmatpush.bf16.msra.mxu0 0
  %120 = vmatpush.bf16.msra.mxu0 0
  %121 = vmatpush.bf16.msra.mxu0 0
  %122 = vmatpush.bf16.msra.mxu0 0
  %123 = vmatpush.bf16.msra.mxu0 0
  %124 = vmatpush.bf16.msra.mxu0 0
  %125 = vmatpush.bf16.msra.mxu0 %v113
  %126 = vmatpush.bf16.msra.mxu0 %v112
  %127 = vmatmul.bf16.gmra.mxu0 %v117
  %v128 = vpop.f32.mrf.mxu0
  %v129 = vadd.f32 %v102, %v128
  %v130 = vpop.f32.mrf.mxu0
  %131 = vdwg.mxu0
  %132 = vst.msk [vmem:[%s7] sm:$0xff] %vm34, %v129
  // Predicated region
  $region30: #{_qnetwork_forward_impl.1} parent=0 // pred_check
    _
  $region31: #{_qnetwork_forward_impl.1} parent=0 // pred_check_branch
    %134 = sbr.rel (0) target = $region33
  $region32: #{_qnetwork_forward_impl.1} parent=0 // pred_region
    _
  $region33: #{_qnetwork_forward_impl.1} parent=0 // pred_fallthru
    _
  // Predicated region
  $region34: #{_qnetwork_forward_impl.1} parent=0 // pred_check
    _
  $region35: #{_qnetwork_forward_impl.1} parent=0 // pred_check_branch
    %136 = sbr.rel (0) target = $region37
  $region36: #{_qnetwork_forward_impl.1} parent=0 // pred_region
    _
  $region37: #{_qnetwork_forward_impl.1} parent=0 // pred_fallthru
    _

</llo_original>
